<compile_context>
chip_gen: v7x
topology: tpu7x:2x2x1
jax: 0.10.0
libtpu: 0.0.40
codegen_flags: <defaults>
</compile_context>

<pallas_src>
import jax
import jax.numpy as jnp
from jax.experimental import pallas as pl
from jax.experimental.pallas import tpu as pltpu


def make_decoder_kernel(n_layers, hid_dim, seq_len, batch, out_dim):
    """Kernel closed over static layer count / sizes."""
    L, H, T, B, O = n_layers, hid_dim, seq_len, batch, out_dim
    G = 4 * H

    def kernel(*refs):
        # inputs: x2d, h0, c0, w0in, whh, [win], bias, wout, bout
        # outputs: pred2d, hout, cout ; scratch: xproj
        x_ref, h0_ref, c0_ref, w0in_ref, whh_ref = refs[:5]
        i = 5
        win_ref = None
        if L > 1:
            win_ref = refs[i]
            i += 1
        bias_ref, wout_ref, bout_ref = refs[i], refs[i + 1], refs[i + 2]
        pred_ref, hout_ref, cout_ref = refs[i + 3], refs[i + 4], refs[i + 5]
        xproj_ref = refs[i + 6]

        t = pl.program_id(0)

        @pl.when(t == 0)
        def _():
            # Seed the carried h/c state (resident output blocks).
            hout_ref[...] = h0_ref[...]
            cout_ref[...] = c0_ref[...]
            # Batched layer-0 input projection for ALL timesteps in one MXU
            # pass (embedding Linear + layer-0 bias already folded in offline).
            xproj_ref[...] = (
                jnp.dot(x_ref[...].astype(jnp.bfloat16), w0in_ref[...],
                        preferred_element_type=jnp.float32)
                + bias_ref[0]
            )

        def gate_step(gates, c_prev):
            # Gate order (reordered offline): [i, f, o, g]
            sig = jax.nn.sigmoid(gates[:, : 3 * H])   # one EUP pass over 3H
            g_g = jnp.tanh(gates[:, 3 * H:])          # one EUP pass over H
            i_g = sig[:, 0 * H:1 * H]
            f_g = sig[:, 1 * H:2 * H]
            o_g = sig[:, 2 * H:3 * H]
            c_new = f_g * c_prev + i_g * g_g
            h_new = o_g * jnp.tanh(c_new)
            return h_new, c_new

        # ---- layer 0: only the recurrent dot on the per-step path ----
        row = pl.multiple_of(t * B, B)
        h_prev = hout_ref[0]
        c_prev = cout_ref[0]
        gates = xproj_ref[pl.ds(row, B), :] + jnp.dot(
            h_prev.astype(jnp.bfloat16), whh_ref[0],
            preferred_element_type=jnp.float32)
        h_new, c_new = gate_step(gates, c_prev)
        hout_ref[0] = h_new
        cout_ref[0] = c_new
        inp = h_new

        # ---- layers 1..L-1: two small dots, no lane-axis concat ----
        # (inter-layer dropout is identity at inference)
        for l in range(1, L):
            h_prev = hout_ref[l]
            c_prev = cout_ref[l]
            gates = (
                jnp.dot(inp.astype(jnp.bfloat16), win_ref[l - 1],
                        preferred_element_type=jnp.float32)
                + jnp.dot(h_prev.astype(jnp.bfloat16), whh_ref[l],
                          preferred_element_type=jnp.float32)
                + bias_ref[l]
            )
            h_new, c_new = gate_step(gates, c_prev)
            hout_ref[l] = h_new
            cout_ref[l] = c_new
            inp = h_new

        # ---- output Linear ----
        pred = jnp.dot(inp.astype(jnp.bfloat16), wout_ref[...],
                       preferred_element_type=jnp.float32) + bout_ref[...]
        # Store into the resident prediction block; HBM writeback is one bulk
        # DMA at grid end.
        pred_ref[pl.ds(row, B), :] = pred.astype(pred_ref.dtype)

    return kernel


@jax.jit
def decoder_forward_seq(x_seq, hidden, cell, packed_params):
    """Run T teacher-forced decoder steps in ONE pallas_call.

    x_seq: (T, B, output_dim); hidden/cell: (n_layers, B, hid_dim)
    packed_params: output of pack_decoder_params (kernel layout).
    """
    T, B, O = x_seq.shape
    L, _, H = hidden.shape
    G = 4 * H

    kernel = make_decoder_kernel(L, H, T, B, O)

    def resident(shape):
        # Constant block index across the T grid axis => DMA'd once, stays in
        # VMEM for the whole call.
        n = len(shape)
        return pl.BlockSpec(shape, lambda t, n=n: (0,) * n)

    # Free reshape (merges contiguous leading dims); avoids an in-kernel
    # relayout for the batched layer-0 projection.
    x2d = x_seq.reshape(T * B, O)

    in_arrays = (x2d, hidden, cell) + tuple(packed_params)
    in_specs = [resident(a.shape) for a in in_arrays]

    out_specs = (
        resident((T * B, O)),     # predictions (resident, bulk writeback)
        resident((L, B, H)),      # h_out (carried state)
        resident((L, B, H)),      # c_out (carried state)
    )
    out_shape = (
        jax.ShapeDtypeStruct((T * B, O), jnp.float32),
        jax.ShapeDtypeStruct((L, B, H), jnp.float32),
        jax.ShapeDtypeStruct((L, B, H), jnp.float32),
    )

    # Real resident footprint; x2 for buffering + headroom, floor at the 32 MiB
    # default, cap at 48 MiB so compiler scratch still fits on v7x (64 MiB/TC).
    in_bytes = sum(int(a.size) * a.dtype.itemsize for a in in_arrays)
    out_bytes = 4 * (T * B * O + 2 * L * B * H)
    scratch_bytes = 4 * T * B * G
    footprint = in_bytes + out_bytes + scratch_bytes
    vmem_limit = int(min(48 * 2**20, max(32 * 2**20, 2 * footprint + 4 * 2**20)))

    pred2d, h_out, c_out = pl.pallas_call(
        kernel,
        out_shape=out_shape,
        grid=(T,),
        in_specs=in_specs,
        out_specs=out_specs,
        scratch_shapes=[pltpu.VMEM((T * B, G), jnp.float32)],
        input_output_aliases={1: 1, 2: 2},   # hidden->h_out, cell->c_out
        compiler_params=pltpu.CompilerParams(
            dimension_semantics=("arbitrary",),   # T axis carries h/c state
            vmem_limit_bytes=vmem_limit,
        ),
    )(*in_arrays)
    return pred2d.reshape(T, B, O), h_out, c_out


def decoder_forward(x, hidden, cell, packed_params):
    """Single-step forward == the PyTorch module's forward()."""
    pred_seq, h_out, c_out = decoder_forward_seq(x[None], hidden, cell,
                                                 packed_params)
    return pred_seq[0], h_out, c_out


def init_decoder_params(key, output_dim, emb_dim, hid_dim, n_layers):
    """PyTorch-equivalent parameters (f32, x@W layout, gate order [i,f,g,o])."""
    keys = jax.random.split(key, 4 + 4 * n_layers)
    scale = 0.1
    params = {
        "w_emb": scale * jax.random.normal(keys[0], (output_dim, emb_dim),
                                           jnp.float32),
        "b_emb": scale * jax.random.normal(keys[1], (1, emb_dim), jnp.float32),
        "w_out": scale * jax.random.normal(keys[2], (hid_dim, output_dim),
                                           jnp.float32),
        "b_out": scale * jax.random.normal(keys[3], (1, output_dim),
                                           jnp.float32),
        "layers": [],
    }
    for l in range(n_layers):
        in_dim = emb_dim if l == 0 else hid_dim
        k0, k1, k2, k3 = keys[4 + 4 * l: 8 + 4 * l]
        wih = scale * jax.random.normal(k0, (in_dim, 4 * hid_dim), jnp.float32)
        whh = scale * jax.random.normal(k1, (hid_dim, 4 * hid_dim), jnp.float32)
        b = scale * (jax.random.normal(k2, (1, 4 * hid_dim), jnp.float32)
                     + jax.random.normal(k3, (1, 4 * hid_dim), jnp.float32))
        params["layers"].append((wih, whh, b))
    return params


def pack_decoder_params(params, hid_dim, weight_dtype=jnp.bfloat16):
    """Offline transform into the kernel layout.

    * embedding Linear folded into layer 0's input projection (dropout is
      identity at inference),
    * gate columns permuted [i,f,g,o] -> [i,f,o,g],
    * per-layer weights stacked: whh (L,H,4H), win (L-1,H,4H), bias (L,1,4H).
    """
    H = hid_dim
    L = len(params["layers"])

    def reorder(w):   # last dim 4H: [i,f,g,o] -> [i,f,o,g]
        return jnp.concatenate(
            [w[..., 0:2 * H], w[..., 3 * H:4 * H], w[..., 2 * H:3 * H]],
            axis=-1)

    wih0, _, b0 = params["layers"][0]
    w0in = reorder(params["w_emb"] @ wih0).astype(weight_dtype)        # (O,4H)
    b0f = reorder(b0 + params["b_emb"] @ wih0).astype(jnp.float32)     # (1,4H)

    whh = jnp.stack([reorder(params["layers"][l][1]) for l in range(L)]
                    ).astype(weight_dtype)                             # (L,H,4H)
    biases = [b0f] + [reorder(params["layers"][l][2]).astype(jnp.float32)
                      for l in range(1, L)]
    bias = jnp.stack(biases)                                           # (L,1,4H)

    packed = [w0in, whh]
    if L > 1:
        win = jnp.stack([reorder(params["layers"][l][0]) for l in range(1, L)]
                        ).astype(weight_dtype)                         # (L-1,H,4H)
        packed.append(win)
    packed += [bias,
               params["w_out"].astype(weight_dtype),                   # (H,O)
               params["b_out"].astype(jnp.float32)]                    # (1,O)
    return tuple(packed)


def decoder_reference_step(x, hidden, cell, params):
    """Plain-JAX f32 reference, faithful to the PyTorch module (eval mode)."""
    H = hidden.shape[-1]
    emb = x @ params["w_emb"] + params["b_emb"]   # dropout = identity (eval)
    inp = emb
    h_list, c_list = [], []
    for l, (wih, whh, b) in enumerate(params["layers"]):
        gates = inp @ wih + hidden[l] @ whh + b   # PyTorch order [i,f,g,o]
        i_g = jax.nn.sigmoid(gates[:, 0 * H:1 * H])
        f_g = jax.nn.sigmoid(gates[:, 1 * H:2 * H])
        g_g = jnp.tanh(gates[:, 2 * H:3 * H])
        o_g = jax.nn.sigmoid(gates[:, 3 * H:4 * H])
        c_new = f_g * cell[l] + i_g * g_g
        h_new = o_g * jnp.tanh(c_new)
        h_list.append(h_new)
        c_list.append(c_new)
        inp = h_new
    pred = inp @ params["w_out"] + params["b_out"]
    return pred, jnp.stack(h_list), jnp.stack(c_list)


def decoder_reference_seq(x_seq, hidden, cell, params):
    preds = []
    h, c = hidden, cell
    for t in range(x_seq.shape[0]):
        p, h, c = decoder_reference_step(x_seq[t], h, c, params)
        preds.append(p)
    return jnp.stack(preds), h, c


if __name__ == "__main__":
    # Small shapes consistent with the module's forward.
    output_dim = 16
    emb_dim = 32
    hid_dim = 32
    n_layers = 2
    batch = 8
    T = 4
    # dropout = 0.1 in the module; identity at inference.

    key = jax.random.PRNGKey(0)
    k_x, k_h, k_c, k_p = jax.random.split(key, 4)

    x_seq = jax.random.normal(k_x, (T, batch, output_dim), jnp.float32)
    hidden = jax.random.normal(k_h, (n_layers, batch, hid_dim), jnp.float32)
    cell = jax.random.normal(k_c, (n_layers, batch, hid_dim), jnp.float32)

    params = init_decoder_params(k_p, output_dim, emb_dim, hid_dim, n_layers)
    packed = pack_decoder_params(params, hid_dim)

    # Kernel uses bf16 MXU operands + folded/reordered weights; reference is
    # pure f32 module math.
    atol = rtol = 2e-2

    # ---- single step: exact module forward() semantics ----
    pred, h_out, c_out = decoder_forward(x_seq[0], hidden, cell, packed)
    jax.block_until_ready((pred, h_out, c_out))
    pred_r, h_r, c_r = decoder_reference_step(x_seq[0], hidden, cell, params)
    assert pred.shape == (batch, output_dim)
    assert h_out.shape == (n_layers, batch, hid_dim)
    assert c_out.shape == (n_layers, batch, hid_dim)
    assert jnp.allclose(pred, pred_r, atol=atol, rtol=rtol)
    assert jnp.allclose(h_out, h_r, atol=atol, rtol=rtol)
    assert jnp.allclose(c_out, c_r, atol=atol, rtol=rtol)

    # ---- T teacher-forced steps fused into one pallas_call ----
    pred_seq, h_T, c_T = decoder_forward_seq(x_seq, hidden, cell, packed)
    jax.block_until_ready((pred_seq, h_T, c_T))
    pred_seq_r, h_T_r, c_T_r = decoder_reference_seq(x_seq, hidden, cell, params)
    assert jnp.allclose(pred_seq, pred_seq_r, atol=atol, rtol=rtol)
    assert jnp.allclose(h_T, h_T_r, atol=atol, rtol=rtol)
    assert jnp.allclose(c_T, c_T_r, atol=atol, rtol=rtol)

    print("KERNEL_OK")
</pallas_src>

<mosaic_0001>
module attributes {stable_mosaic.version = 11 : i64} {
  func.func @kernel(%arg0: i32, %arg1: memref<8x16xf32, #tpu.memory_space<vmem>>, %arg2: memref<2x8x32xf32, #tpu.memory_space<vmem>>, %arg3: memref<2x8x32xf32, #tpu.memory_space<vmem>>, %arg4: memref<16x128xbf16, #tpu.memory_space<vmem>>, %arg5: memref<2x32x128xbf16, #tpu.memory_space<vmem>>, %arg6: memref<1x32x128xbf16, #tpu.memory_space<vmem>>, %arg7: memref<2x1x128xf32, #tpu.memory_space<vmem>>, %arg8: memref<32x16xbf16, #tpu.memory_space<vmem>>, %arg9: memref<1x16xf32, #tpu.memory_space<vmem>>, %arg10: memref<8x16xf32, #tpu.memory_space<vmem>>, %arg11: memref<2x8x32xf32, #tpu.memory_space<vmem>>, %arg12: memref<2x8x32xf32, #tpu.memory_space<vmem>>, %arg13: memref<8x128xf32, #tpu.memory_space<vmem>>) attributes {dimension_semantics = [#tpu.dimension_semantics<arbitrary>], iteration_bounds = array<i64: 1>, scalar_prefetch = 0 : i64, scratch_operands = 1 : i64, tpu.core_type = #tpu.core_type<tc>, window_params = [{pipeline_mode = #tpu.pipeline_mode<synchronous>, transform_indices = @transform_0, window_bounds = array<i64: 8, 16>}, {pipeline_mode = #tpu.pipeline_mode<synchronous>, transform_indices = @transform_1, window_bounds = array<i64: 2, 8, 32>}, {pipeline_mode = #tpu.pipeline_mode<synchronous>, transform_indices = @transform_2, window_bounds = array<i64: 2, 8, 32>}, {pipeline_mode = #tpu.pipeline_mode<synchronous>, transform_indices = @transform_3, window_bounds = array<i64: 16, 128>}, {pipeline_mode = #tpu.pipeline_mode<synchronous>, transform_indices = @transform_4, window_bounds = array<i64: 2, 32, 128>}, {pipeline_mode = #tpu.pipeline_mode<synchronous>, transform_indices = @transform_5, window_bounds = array<i64: 1, 32, 128>}, {pipeline_mode = #tpu.pipeline_mode<synchronous>, transform_indices = @transform_6, window_bounds = array<i64: 2, 1, 128>}, {pipeline_mode = #tpu.pipeline_mode<synchronous>, transform_indices = @transform_7, window_bounds = array<i64: 32, 16>}, {pipeline_mode = #tpu.pipeline_mode<synchronous>, transform_indices = @transform_8, window_bounds = array<i64: 1, 16>}, {pipeline_mode = #tpu.pipeline_mode<synchronous>, transform_indices = @transform_9, window_bounds = array<i64: 8, 16>}, {pipeline_mode = #tpu.pipeline_mode<synchronous>, transform_indices = @transform_10, window_bounds = array<i64: 2, 8, 32>}, {pipeline_mode = #tpu.pipeline_mode<synchronous>, transform_indices = @transform_11, window_bounds = array<i64: 2, 8, 32>}]} {
    %c0_i32 = arith.constant 0 : i32
    %0 = arith.cmpi eq, %arg0, %c0_i32 : i32
    %1 = arith.extui %0 : i1 to i32
    %c0_i32_0 = arith.constant 0 : i32
    %2 = arith.cmpi ne, %1, %c0_i32_0 : i32
    scf.if %2 {
      %c0_46 = arith.constant 0 : index
      %c0_47 = arith.constant 0 : index
      %c0_48 = arith.constant 0 : index
      %85 = vector.load %arg2[%c0_46, %c0_47, %c0_48] : memref<2x8x32xf32, #tpu.memory_space<vmem>>, vector<2x8x32xf32>
      %c0_49 = arith.constant 0 : index
      %c0_50 = arith.constant 0 : index
      %c0_51 = arith.constant 0 : index
      %86 = vector.load %arg11[%c0_49, %c0_50, %c0_51] : memref<2x8x32xf32, #tpu.memory_space<vmem>>, vector<2x8x32xf32>
      tpu.vector_store %arg11[%c0_49, %c0_50, %c0_51], %85 {strides = array<i32>} : memref<2x8x32xf32, #tpu.memory_space<vmem>>, vector<2x8x32xf32>,
      %c0_52 = arith.constant 0 : index
      %c0_53 = arith.constant 0 : index
      %c0_54 = arith.constant 0 : index
      %87 = vector.load %arg3[%c0_52, %c0_53, %c0_54] : memref<2x8x32xf32, #tpu.memory_space<vmem>>, vector<2x8x32xf32>
      %c0_55 = arith.constant 0 : index
      %c0_56 = arith.constant 0 : index
      %c0_57 = arith.constant 0 : index
      %88 = vector.load %arg12[%c0_55, %c0_56, %c0_57] : memref<2x8x32xf32, #tpu.memory_space<vmem>>, vector<2x8x32xf32>
      tpu.vector_store %arg12[%c0_55, %c0_56, %c0_57], %87 {strides = array<i32>} : memref<2x8x32xf32, #tpu.memory_space<vmem>>, vector<2x8x32xf32>,
      %c0_58 = arith.constant 0 : index
      %c0_59 = arith.constant 0 : index
      %89 = vector.load %arg1[%c0_58, %c0_59] : memref<8x16xf32, #tpu.memory_space<vmem>>, vector<8x16xf32>
      %90 = arith.truncf %89 : vector<8x16xf32> to vector<8x16xbf16>
      %c0_60 = arith.constant 0 : index
      %c0_61 = arith.constant 0 : index
      %91 = vector.load %arg4[%c0_60, %c0_61] : memref<16x128xbf16, #tpu.memory_space<vmem>>, vector<16x128xbf16>
      %cst_62 = arith.constant dense<0.000000e+00> : vector<8x128xf32>
      %92 = tpu.matmul %90, %91, %cst_62 {dimension_numbers = #tpu.dot_dimension_numbers<[1], [0], [0], [1], [0, 0, 1, 1], [], []>} : vector<8x16xbf16>, vector<16x128xbf16>, vector<8x128xf32> -> vector<8x128xf32>
      %c0_63 = arith.constant 0 : index
      %c0_64 = arith.constant 0 : index
      %c0_65 = arith.constant 0 : index
      %93 = vector.load %arg7[%c0_63, %c0_64, %c0_65] : memref<2x1x128xf32, #tpu.memory_space<vmem>>, vector<1x1x128xf32>
      %94 = vector.shape_cast %93 : vector<1x1x128xf32> to vector<1x128xf32>
      %95 = vector.broadcast %94 : vector<1x128xf32> to vector<8x128xf32>
      %96 = arith.addf %92, %95 : vector<8x128xf32>
      %c0_66 = arith.constant 0 : index
      %c0_67 = arith.constant 0 : index
      %97 = vector.load %arg13[%c0_66, %c0_67] : memref<8x128xf32, #tpu.memory_space<vmem>>, vector<8x128xf32>
      tpu.vector_store %arg13[%c0_66, %c0_67], %96 {strides = array<i32>} : memref<8x128xf32, #tpu.memory_space<vmem>>, vector<8x128xf32>,
    } else {
    }
    %c8_i32 = arith.constant 8 : i32
    %3 = arith.muli %arg0, %c8_i32 : i32
    %4 = tpu.assume_multiple %3, 8 : i32
    %c0 = arith.constant 0 : index
    %c0_1 = arith.constant 0 : index
    %c0_2 = arith.constant 0 : index
    %5 = vector.load %arg11[%c0, %c0_1, %c0_2] : memref<2x8x32xf32, #tpu.memory_space<vmem>>, vector<1x8x32xf32>
    %6 = vector.shape_cast %5 : vector<1x8x32xf32> to vector<8x32xf32>
    %c0_3 = arith.constant 0 : index
    %c0_4 = arith.constant 0 : index
    %c0_5 = arith.constant 0 : index
    %7 = vector.load %arg12[%c0_3, %c0_4, %c0_5] : memref<2x8x32xf32, #tpu.memory_space<vmem>>, vector<1x8x32xf32>
    %8 = vector.shape_cast %7 : vector<1x8x32xf32> to vector<8x32xf32>
    %9 = arith.index_cast %4 : i32 to index
    %c0_6 = arith.constant 0 : index
    %10 = vector.load %arg13[%9, %c0_6] : memref<8x128xf32, #tpu.memory_space<vmem>>, vector<8x128xf32>
    %11 = arith.truncf %6 : vector<8x32xf32> to vector<8x32xbf16>
    %c0_7 = arith.constant 0 : index
    %c0_8 = arith.constant 0 : index
    %c0_9 = arith.constant 0 : index
    %12 = vector.load %arg5[%c0_7, %c0_8, %c0_9] : memref<2x32x128xbf16, #tpu.memory_space<vmem>>, vector<1x32x128xbf16>
    %13 = vector.shape_cast %12 : vector<1x32x128xbf16> to vector<32x128xbf16>
    %cst = arith.constant dense<0.000000e+00> : vector<8x128xf32>
    %14 = tpu.matmul %11, %13, %cst {dimension_numbers = #tpu.dot_dimension_numbers<[1], [0], [0], [1], [0, 0, 1, 1], [], []>} : vector<8x32xbf16>, vector<32x128xbf16>, vector<8x128xf32> -> vector<8x128xf32>
    %15 = arith.addf %10, %14 : vector<8x128xf32>
    %16 = vector.extract_strided_slice %15 {offsets = [0, 0], sizes = [8, 96], strides = [1, 1]} : vector<8x128xf32> to vector<8x96xf32>
    %17 = arith.negf %16 : vector<8x96xf32>
    %18 = math.exp %17 : vector<8x96xf32>
    %cst_10 = arith.constant 1.000000e+00 : f32
    %19 = vector.broadcast %cst_10 : f32 to vector<8x96xf32>
    %20 = arith.addf %19, %18 : vector<8x96xf32>
    %21 = arith.divf %19, %20 : vector<8x96xf32>
    %22 = vector.extract_strided_slice %15 {offsets = [0, 96], sizes = [8, 32], strides = [1, 1]} : vector<8x128xf32> to vector<8x32xf32>
    %23 = math.tanh %22 : vector<8x32xf32>
    %24 = vector.extract_strided_slice %21 {offsets = [0, 0], sizes = [8, 32], strides = [1, 1]} : vector<8x96xf32> to vector<8x32xf32>
    %25 = vector.extract_strided_slice %21 {offsets = [0, 32], sizes = [8, 32], strides = [1, 1]} : vector<8x96xf32> to vector<8x32xf32>
    %26 = vector.extract_strided_slice %21 {offsets = [0, 64], sizes = [8, 32], strides = [1, 1]} : vector<8x96xf32> to vector<8x32xf32>
    %27 = arith.mulf %25, %8 : vector<8x32xf32>
    %28 = arith.mulf %24, %23 : vector<8x32xf32>
    %29 = arith.addf %27, %28 : vector<8x32xf32>
    %30 = math.tanh %29 : vector<8x32xf32>
    %31 = arith.mulf %26, %30 : vector<8x32xf32>
    %c0_11 = arith.constant 0 : index
    %c0_12 = arith.constant 0 : index
    %c0_13 = arith.constant 0 : index
    %32 = vector.load %arg11[%c0_11, %c0_12, %c0_13] : memref<2x8x32xf32, #tpu.memory_space<vmem>>, vector<1x8x32xf32>
    %33 = vector.shape_cast %32 : vector<1x8x32xf32> to vector<8x32xf32>
    %34 = vector.shape_cast %31 : vector<8x32xf32> to vector<1x8x32xf32>
    tpu.vector_store %arg11[%c0_11, %c0_12, %c0_13], %34 {strides = array<i32>} : memref<2x8x32xf32, #tpu.memory_space<vmem>>, vector<1x8x32xf32>,
    %c0_14 = arith.constant 0 : index
    %c0_15 = arith.constant 0 : index
    %c0_16 = arith.constant 0 : index
    %35 = vector.load %arg12[%c0_14, %c0_15, %c0_16] : memref<2x8x32xf32, #tpu.memory_space<vmem>>, vector<1x8x32xf32>
    %36 = vector.shape_cast %35 : vector<1x8x32xf32> to vector<8x32xf32>
    %37 = vector.shape_cast %29 : vector<8x32xf32> to vector<1x8x32xf32>
    tpu.vector_store %arg12[%c0_14, %c0_15, %c0_16], %37 {strides = array<i32>} : memref<2x8x32xf32, #tpu.memory_space<vmem>>, vector<1x8x32xf32>,
    %c1 = arith.constant 1 : index
    %c0_17 = arith.constant 0 : index
    %c0_18 = arith.constant 0 : index
    %38 = vector.load %arg11[%c1, %c0_17, %c0_18] : memref<2x8x32xf32, #tpu.memory_space<vmem>>, vector<1x8x32xf32>
    %39 = vector.shape_cast %38 : vector<1x8x32xf32> to vector<8x32xf32>
    %c1_19 = arith.constant 1 : index
    %c0_20 = arith.constant 0 : index
    %c0_21 = arith.constant 0 : index
    %40 = vector.load %arg12[%c1_19, %c0_20, %c0_21] : memref<2x8x32xf32, #tpu.memory_space<vmem>>, vector<1x8x32xf32>
    %41 = vector.shape_cast %40 : vector<1x8x32xf32> to vector<8x32xf32>
    %42 = arith.truncf %31 : vector<8x32xf32> to vector<8x32xbf16>
    %c0_22 = arith.constant 0 : index
    %c0_23 = arith.constant 0 : index
    %c0_24 = arith.constant 0 : index
    %43 = vector.load %arg6[%c0_22, %c0_23, %c0_24] : memref<1x32x128xbf16, #tpu.memory_space<vmem>>, vector<1x32x128xbf16>
    %44 = vector.shape_cast %43 : vector<1x32x128xbf16> to vector<32x128xbf16>
    %cst_25 = arith.constant dense<0.000000e+00> : vector<8x128xf32>
    %45 = tpu.matmul %42, %44, %cst_25 {dimension_numbers = #tpu.dot_dimension_numbers<[1], [0], [0], [1], [0, 0, 1, 1], [], []>} : vector<8x32xbf16>, vector<32x128xbf16>, vector<8x128xf32> -> vector<8x128xf32>
    %46 = arith.truncf %39 : vector<8x32xf32> to vector<8x32xbf16>
    %c1_26 = arith.constant 1 : index
    %c0_27 = arith.constant 0 : index
    %c0_28 = arith.constant 0 : index
    %47 = vector.load %arg5[%c1_26, %c0_27, %c0_28] : memref<2x32x128xbf16, #tpu.memory_space<vmem>>, vector<1x32x128xbf16>
    %48 = vector.shape_cast %47 : vector<1x32x128xbf16> to vector<32x128xbf16>
    %cst_29 = arith.constant dense<0.000000e+00> : vector<8x128xf32>
    %49 = tpu.matmul %46, %48, %cst_29 {dimension_numbers = #tpu.dot_dimension_numbers<[1], [0], [0], [1], [0, 0, 1, 1], [], []>} : vector<8x32xbf16>, vector<32x128xbf16>, vector<8x128xf32> -> vector<8x128xf32>
    %50 = arith.addf %45, %49 : vector<8x128xf32>
    %c1_30 = arith.constant 1 : index
    %c0_31 = arith.constant 0 : index
    %c0_32 = arith.constant 0 : index
    %51 = vector.load %arg7[%c1_30, %c0_31, %c0_32] : memref<2x1x128xf32, #tpu.memory_space<vmem>>, vector<1x1x128xf32>
    %52 = vector.shape_cast %51 : vector<1x1x128xf32> to vector<1x128xf32>
    %53 = vector.broadcast %52 : vector<1x128xf32> to vector<8x128xf32>
    %54 = arith.addf %50, %53 : vector<8x128xf32>
    %55 = vector.extract_strided_slice %54 {offsets = [0, 0], sizes = [8, 96], strides = [1, 1]} : vector<8x128xf32> to vector<8x96xf32>
    %56 = arith.negf %55 : vector<8x96xf32>
    %57 = math.exp %56 : vector<8x96xf32>
    %cst_33 = arith.constant 1.000000e+00 : f32
    %58 = vector.broadcast %cst_33 : f32 to vector<8x96xf32>
    %59 = arith.addf %58, %57 : vector<8x96xf32>
    %60 = arith.divf %58, %59 : vector<8x96xf32>
    %61 = vector.extract_strided_slice %54 {offsets = [0, 96], sizes = [8, 32], strides = [1, 1]} : vector<8x128xf32> to vector<8x32xf32>
    %62 = math.tanh %61 : vector<8x32xf32>
    %63 = vector.extract_strided_slice %60 {offsets = [0, 0], sizes = [8, 32], strides = [1, 1]} : vector<8x96xf32> to vector<8x32xf32>
    %64 = vector.extract_strided_slice %60 {offsets = [0, 32], sizes = [8, 32], strides = [1, 1]} : vector<8x96xf32> to vector<8x32xf32>
    %65 = vector.extract_strided_slice %60 {offsets = [0, 64], sizes = [8, 32], strides = [1, 1]} : vector<8x96xf32> to vector<8x32xf32>
    %66 = arith.mulf %64, %41 : vector<8x32xf32>
    %67 = arith.mulf %63, %62 : vector<8x32xf32>
    %68 = arith.addf %66, %67 : vector<8x32xf32>
    %69 = math.tanh %68 : vector<8x32xf32>
    %70 = arith.mulf %65, %69 : vector<8x32xf32>
    %c1_34 = arith.constant 1 : index
    %c0_35 = arith.constant 0 : index
    %c0_36 = arith.constant 0 : index
    %71 = vector.load %arg11[%c1_34, %c0_35, %c0_36] : memref<2x8x32xf32, #tpu.memory_space<vmem>>, vector<1x8x32xf32>
    %72 = vector.shape_cast %71 : vector<1x8x32xf32> to vector<8x32xf32>
    %73 = vector.shape_cast %70 : vector<8x32xf32> to vector<1x8x32xf32>
    tpu.vector_store %arg11[%c1_34, %c0_35, %c0_36], %73 {strides = array<i32>} : memref<2x8x32xf32, #tpu.memory_space<vmem>>, vector<1x8x32xf32>,
    %c1_37 = arith.constant 1 : index
    %c0_38 = arith.constant 0 : index
    %c0_39 = arith.constant 0 : index
    %74 = vector.load %arg12[%c1_37, %c0_38, %c0_39] : memref<2x8x32xf32, #tpu.memory_space<vmem>>, vector<1x8x32xf32>
    %75 = vector.shape_cast %74 : vector<1x8x32xf32> to vector<8x32xf32>
    %76 = vector.shape_cast %68 : vector<8x32xf32> to vector<1x8x32xf32>
    tpu.vector_store %arg12[%c1_37, %c0_38, %c0_39], %76 {strides = array<i32>} : memref<2x8x32xf32, #tpu.memory_space<vmem>>, vector<1x8x32xf32>,
    %77 = arith.truncf %70 : vector<8x32xf32> to vector<8x32xbf16>
    %c0_40 = arith.constant 0 : index
    %c0_41 = arith.constant 0 : index
    %78 = vector.load %arg8[%c0_40, %c0_41] : memref<32x16xbf16, #tpu.memory_space<vmem>>, vector<32x16xbf16>
    %cst_42 = arith.constant dense<0.000000e+00> : vector<8x16xf32>
    %79 = tpu.matmul %77, %78, %cst_42 {dimension_numbers = #tpu.dot_dimension_numbers<[1], [0], [0], [1], [0, 0, 1, 1], [], []>} : vector<8x32xbf16>, vector<32x16xbf16>, vector<8x16xf32> -> vector<8x16xf32>
    %c0_43 = arith.constant 0 : index
    %c0_44 = arith.constant 0 : index
    %80 = vector.load %arg9[%c0_43, %c0_44] : memref<1x16xf32, #tpu.memory_space<vmem>>, vector<1x16xf32>
    %81 = vector.broadcast %80 : vector<1x16xf32> to vector<8x16xf32>
    %82 = arith.addf %79, %81 : vector<8x16xf32>
    %83 = arith.index_cast %4 : i32 to index
    %c0_45 = arith.constant 0 : index
    %84 = vector.load %arg10[%83, %c0_45] : memref<8x16xf32, #tpu.memory_space<vmem>>, vector<8x16xf32>
    tpu.vector_store %arg10[%83, %c0_45], %82 {strides = array<i32>} : memref<8x16xf32, #tpu.memory_space<vmem>>, vector<8x16xf32>,
    return
  }
  func.func @transform_0(%arg0: i32) -> (i32, i32) {
    %c0_i32 = arith.constant 0 : i32
    %c0_i32_0 = arith.constant 0 : i32
    %c0_i32_1 = arith.constant 0 : i32
    return %c0_i32, %c0_i32_0 : i32, i32
  }
  func.func @transform_1(%arg0: i32) -> (i32, i32, i32) {
    %c0_i32 = arith.constant 0 : i32
    %c0_i32_0 = arith.constant 0 : i32
    %c0_i32_1 = arith.constant 0 : i32
    %c0_i32_2 = arith.constant 0 : i32
    return %c0_i32, %c0_i32_0, %c0_i32_1 : i32, i32, i32
  }
  func.func @transform_2(%arg0: i32) -> (i32, i32, i32) {
    %c0_i32 = arith.constant 0 : i32
    %c0_i32_0 = arith.constant 0 : i32
    %c0_i32_1 = arith.constant 0 : i32
    %c0_i32_2 = arith.constant 0 : i32
    return %c0_i32, %c0_i32_0, %c0_i32_1 : i32, i32, i32
  }
  func.func @transform_3(%arg0: i32) -> (i32, i32) {
    %c0_i32 = arith.constant 0 : i32
    %c0_i32_0 = arith.constant 0 : i32
    %c0_i32_1 = arith.constant 0 : i32
    return %c0_i32, %c0_i32_0 : i32, i32
  }
  func.func @transform_4(%arg0: i32) -> (i32, i32, i32) {
    %c0_i32 = arith.constant 0 : i32
    %c0_i32_0 = arith.constant 0 : i32
    %c0_i32_1 = arith.constant 0 : i32
    %c0_i32_2 = arith.constant 0 : i32
    return %c0_i32, %c0_i32_0, %c0_i32_1 : i32, i32, i32
  }
  func.func @transform_5(%arg0: i32) -> (i32, i32, i32) {
    %c0_i32 = arith.constant 0 : i32
    %c0_i32_0 = arith.constant 0 : i32
    %c0_i32_1 = arith.constant 0 : i32
    %c0_i32_2 = arith.constant 0 : i32
    return %c0_i32, %c0_i32_0, %c0_i32_1 : i32, i32, i32
  }
  func.func @transform_6(%arg0: i32) -> (i32, i32, i32) {
    %c0_i32 = arith.constant 0 : i32
    %c0_i32_0 = arith.constant 0 : i32
    %c0_i32_1 = arith.constant 0 : i32
    %c0_i32_2 = arith.constant 0 : i32
    return %c0_i32, %c0_i32_0, %c0_i32_1 : i32, i32, i32
  }
  func.func @transform_7(%arg0: i32) -> (i32, i32) {
    %c0_i32 = arith.constant 0 : i32
    %c0_i32_0 = arith.constant 0 : i32
    %c0_i32_1 = arith.constant 0 : i32
    return %c0_i32, %c0_i32_0 : i32, i32
  }
  func.func @transform_8(%arg0: i32) -> (i32, i32) {
    %c0_i32 = arith.constant 0 : i32
    %c0_i32_0 = arith.constant 0 : i32
    %c0_i32_1 = arith.constant 0 : i32
    return %c0_i32, %c0_i32_0 : i32, i32
  }
  func.func @transform_9(%arg0: i32) -> (i32, i32) {
    %c0_i32 = arith.constant 0 : i32
    %c0_i32_0 = arith.constant 0 : i32
    %c0_i32_1 = arith.constant 0 : i32
    return %c0_i32, %c0_i32_0 : i32, i32
  }
  func.func @transform_10(%arg0: i32) -> (i32, i32, i32) {
    %c0_i32 = arith.constant 0 : i32
    %c0_i32_0 = arith.constant 0 : i32
    %c0_i32_1 = arith.constant 0 : i32
    %c0_i32_2 = arith.constant 0 : i32
    return %c0_i32, %c0_i32_0, %c0_i32_1 : i32, i32, i32
  }
  func.func @transform_11(%arg0: i32) -> (i32, i32, i32) {
    %c0_i32 = arith.constant 0 : i32
    %c0_i32_0 = arith.constant 0 : i32
    %c0_i32_1 = arith.constant 0 : i32
    %c0_i32_2 = arith.constant 0 : i32
    return %c0_i32, %c0_i32_0, %c0_i32_1 : i32, i32, i32
  }
}

</mosaic_0001>

<llo_original>
// kernel: decoder_forward_seq.1
$region0: #{decoder_forward_seq.1}
  #allocation0 [shape = 'u32[]', space=smem, size = 0x4, offset = 0x4, fixed_abs, tag = 'smem constant byte address 0x4 - core index']
  #allocation1 [shape = 'u32[144,128]{1,0:T(1,128)}', space=vmem, size = 0x12000, scoped, tag = 'internal scratch']
  #allocation2 [shape = 'f32[8,128]{1,0:T(8,128)}', space=vmem, size = 0x1000, scoped, tag = 'scratch operand']
  %s0 = inlined_call_operand.vmem [shape: f32[8,16], index: 0, kind: input, shape index: {}]
  %s1 = inlined_call_operand.vmem [shape: f32[2,8,32], index: 1, kind: input, shape index: {}, may-alias: {1,10}]
  %s2 = inlined_call_operand.vmem [shape: f32[2,8,32], index: 2, kind: input, shape index: {}, may-alias: {2,11}]
  %s3 = inlined_call_operand.vmem [shape: bf16[16,128], index: 3, kind: input, shape index: {}]
  %s4 = inlined_call_operand.vmem [shape: bf16[2,32,128], index: 4, kind: input, shape index: {}]
  %s5 = inlined_call_operand.vmem [shape: bf16[1,32,128], index: 5, kind: input, shape index: {}]
  %s6 = inlined_call_operand.vmem [shape: f32[2,1,128], index: 6, kind: input, shape index: {}]
  %s7 = inlined_call_operand.vmem [shape: bf16[32,16], index: 7, kind: input, shape index: {}]
  %s8 = inlined_call_operand.vmem [shape: f32[1,16], index: 8, kind: input, shape index: {}]
  %s9 = inlined_call_operand.hbm [shape: f32[8,16], index: 9, kind: output, shape index: {0}]
  %s10 = inlined_call_operand.vmem [shape: f32[2,8,32], index: 10, kind: output, shape index: {1}, may-alias: {1,10}]
  %s11 = inlined_call_operand.vmem [shape: f32[2,8,32], index: 11, kind: output, shape index: {2}, may-alias: {2,11}]
  %12 = xla_tuple %s9, %s10, %s11
  %s13 = sld [smem:[#allocation0]]
  $region66: #{decoder_forward_seq.1} parent=0
    _
  %s15 = ssub.s32 1, %s13
  %s16 = scalar_select 0, %s15, %s13
  $region1: #{decoder_forward_seq.1} parent=0
    #allocation3 [shape = 'u8[4096]{0}', space=vmem, size = 0x1000, scoped, tag = 'output window, operand 0, single buffered']
    #allocation4 [shape = 's32[1]{0}', space=sflag, size = 0x4, scoped, tag = 'scoped memory for decoder_forward_seq.1']
    %17 = vsyncpa [#allocation4], 0
    // Predicated region
    $region2: #{decoder_forward_seq.1} parent=1 // pred_check
      _
    $region3: #{decoder_forward_seq.1} parent=1 // pred_check_branch
      %19 = sbr.rel (0) target = $region5
    $region4: #{decoder_forward_seq.1} parent=1 // pred_region
      _
    $region5: #{decoder_forward_seq.1} parent=1 // pred_fallthru
      _
    // Predicated region
    $region6: #{decoder_forward_seq.1} parent=1 // pred_check
      _
    $region7: #{decoder_forward_seq.1} parent=1 // pred_check_branch
      %21 = sbr.rel (0) target = $region9
    $region8: #{decoder_forward_seq.1} parent=1 // pred_region
      _
    $region9: #{decoder_forward_seq.1} parent=1 // pred_fallthru
      _
    // Predicated region
    $region10: #{decoder_forward_seq.1} parent=1 // pred_check
      _
    $region11: #{decoder_forward_seq.1} parent=1 // pred_check_branch
      %23 = sbr.rel (0) target = $region13
    $region12: #{decoder_forward_seq.1} parent=1 // pred_region
      _
    $region13: #{decoder_forward_seq.1} parent=1 // pred_fallthru
      _
    // Predicated region
    $region14: #{decoder_forward_seq.1} parent=1 // pred_check
      _
    $region15: #{decoder_forward_seq.1} parent=1 // pred_check_branch
      %25 = sbr.rel (0) target = $region17
    $region16: #{decoder_forward_seq.1} parent=1 // pred_region
      _
    $region17: #{decoder_forward_seq.1} parent=1 // pred_fallthru
      _
    // Predicated region
    $region18: #{decoder_forward_seq.1} parent=1 // pred_check
      _
    $region19: #{decoder_forward_seq.1} parent=1 // pred_check_branch
      %27 = sbr.rel (0) target = $region21
    $region20: #{decoder_forward_seq.1} parent=1 // pred_region
      _
    $region21: #{decoder_forward_seq.1} parent=1 // pred_fallthru
      _
    // Predicated region
    $region22: #{decoder_forward_seq.1} parent=1 // pred_check
      _
    $region23: #{decoder_forward_seq.1} parent=1 // pred_check_branch
      %29 = sbr.rel (0) target = $region25
    $region24: #{decoder_forward_seq.1} parent=1 // pred_region
      _
    $region25: #{decoder_forward_seq.1} parent=1 // pred_fallthru
      _
    // Predicated region
    $region26: #{decoder_forward_seq.1} parent=1 // pred_check
      _
    $region27: #{decoder_forward_seq.1} parent=1 // pred_check_branch
      %31 = sbr.rel (0) target = $region29
    $region28: #{decoder_forward_seq.1} parent=1 // pred_region
      _
    $region29: #{decoder_forward_seq.1} parent=1 // pred_fallthru
      _
    // Predicated region
    $region30: #{decoder_forward_seq.1} parent=1 // pred_check
      _
    $region31: #{decoder_forward_seq.1} parent=1 // pred_check_branch
      %33 = sbr.rel (0) target = $region33
    $region32: #{decoder_forward_seq.1} parent=1 // pred_region
      _
    $region33: #{decoder_forward_seq.1} parent=1 // pred_fallthru
      _
    // Predicated region
    $region34: #{decoder_forward_seq.1} parent=1 // pred_check
      _
    $region35: #{decoder_forward_seq.1} parent=1 // pred_check_branch
      %35 = sbr.rel (0) target = $region37
    $region36: #{decoder_forward_seq.1} parent=1 // pred_region
      _
    $region37: #{decoder_forward_seq.1} parent=1 // pred_fallthru
      _
    %p37 = scmp.eq.s32.totalorder 0, 0
    // Predicated region
    $region38: #{decoder_forward_seq.1} parent=1 // pred_check
      %p38 = pneg %p37
    $region39: #{decoder_forward_seq.1} parent=1 // pred_check_branch
      %40 = sbr.rel (%p38) target = $region41
    $region40: #{decoder_forward_seq.1} parent=1 // pred_region
      %v41 = vld [vmem:[%s1] sm:$0xff]
      %v42 = vld [vmem:[%s1 + $0x8] sm:$0xff]
      %vm43 = vcmask 261120
      %44 = vst.msk [vmem:[%s10] sm:$0xff] %vm43, %v41
      %45 = vst.msk [vmem:[%s10 + $0x8] sm:$0xff] %vm43, %v42
      %v46 = vld [vmem:[%s2] sm:$0xff]
      %v47 = vld [vmem:[%s2 + $0x8] sm:$0xff]
      %48 = vst.msk [vmem:[%s11] sm:$0xff] %vm43, %v46
      %49 = vst.msk [vmem:[%s11 + $0x8] sm:$0xff] %vm43, %v47
      %v50 = vld [vmem:[%s0] sm:$0xff]
      %v51 = vpack.c.bf16 %v50, %v50
      %v52 = vld [vmem:[%s3] sm:$0xf]
      %v53 = vld [vmem:[%s3 + $0x4] sm:$0xf]
      %v54 = vld [vmem:[%s6] sm:$0x1]
      %v56 = vlaneseq
      %v57 = vshrl.u32 %v56, 7
      %v58 = vsub.s32 0, %v57
      %v59 = vrot.slane %v54, %v58
      %v63 = vunpack.c.l.b16 %v52
      %v64 = vunpack.c.l.b16 %v53
      %v65 = vpack.c.b16 %v64, %v63
      %vm67 = vcmask 130048
      %v69 = vsel %vm67, %v51, 0
      %71 = vmatprep.subr.bf16.mxu0 0
      %72 = vmatpush1.bf16.msra.mxu0 %v65
      %73 = vmatprep.subr.bf16.mxu0 0
      %74 = vmatpush1.bf16.msra.mxu0 0
      %75 = vmatprep.subr.bf16.mxu0 0
      %76 = vmatpush1.bf16.msra.mxu0 0
      %77 = vmatprep.subr.bf16.mxu0 0
      %78 = vmatpush1.bf16.msra.mxu0 0
      %79 = vmatprep.subr.bf16.mxu0 0
      %80 = vmatpush1.bf16.msra.mxu0 0
      %81 = vmatprep.subr.bf16.mxu0 0
      %82 = vmatpush1.bf16.msra.mxu0 0
      %83 = vmatprep.subr.bf16.mxu0 0
      %84 = vmatpush1.bf16.msra.mxu0 0
      %85 = vmatprep.subr.bf16.mxu0 0
      %86 = vmatpush1.bf16.msra.mxu0 0
      %87 = vmatprep.subr.bf16.mxu0 0
      %88 = vmatpush1.bf16.msra.mxu0 0
      %89 = vmatprep.subr.bf16.mxu0 0
      %90 = vmatpush1.bf16.msra.mxu0 0
      %91 = vmatprep.subr.bf16.mxu0 0
      %92 = vmatpush1.bf16.msra.mxu0 0
      %93 = vmatprep.subr.bf16.mxu0 0
      %94 = vmatpush1.bf16.msra.mxu0 0
      %95 = vmatprep.subr.bf16.mxu0 0
      %96 = vmatpush1.bf16.msra.mxu0 0
      %97 = vmatprep.subr.bf16.mxu0 0
      %98 = vmatpush1.bf16.msra.mxu0 0
      %99 = vmatprep.subr.bf16.mxu0 0
      %100 = vmatpush1.bf16.msra.mxu0 0
      %101 = vmatprep.subr.bf16.mxu0 0
      %102 = vmatpush1.bf16.msra.mxu0 0
      %103 = vmatprep.mubr.bf16.mxu0 0
      %104 = vmatmul.mubr.bf16.gmra.mrb[0].mxu0 %v69
      %v105 = vpop.f32.mrb[0].mxu0
      %v106 = vadd.f32 %v59, %v105
      %v107 = vpop.f32.mrb[0].mxu0
      %v108 = vpop.f32.mrb[0].mxu0
      %v109 = vpop.f32.mrb[0].mxu0
      %110 = vdwg.mxu0
      %111 = vst [vmem:[#allocation2] sm:$0xff] %v106
    $region41: #{decoder_forward_seq.1} parent=1 // pred_fallthru
      _
    %s112 = smul.u32 0, 8
    %v113 = vld [vmem:[%s10] sm:$0xff]
    %v114 = vld [vmem:[%s11] sm:$0xff]
    %s115 = scalar_lea.vmem [#allocation2], %s112
    %v116 = vld [vmem:[%s115] sm:$0xff]
    %v117 = vpack.c.bf16 %v113, %v113
    %v118 = vld [vmem:[%s4] sm:$0xf]
    %v119 = vld [vmem:[%s4 + $0x4] sm:$0xf]
    %v120 = vld [vmem:[%s4 + $0x8] sm:$0xf]
    %v121 = vld [vmem:[%s4 + $0xc] sm:$0xf]
    %v126 = vunpack.c.l.b16 %v118
    %v127 = vunpack.c.l.b16 %v119
    %v128 = vunpack.c.l.b16 %v120
    %v129 = vunpack.c.l.b16 %v121
    %v130 = vpack.c.b16 %v127, %v126
    %v131 = vpack.c.b16 %v129, %v128
    %vm134 = vcmask 261120
    %v136 = vsel %vm134, %v117, 0
    %138 = vmatprep.subr.bf16.mxu0 0
    %139 = vmatpush1.bf16.msra.mxu0 %v130
    %140 = vmatprep.subr.bf16.mxu0 0
    %141 = vmatpush1.bf16.msra.mxu0 %v131
    %142 = vmatprep.subr.bf16.mxu0 0
    %143 = vmatpush1.bf16.msra.mxu0 0
    %144 = vmatprep.subr.bf16.mxu0 0
    %145 = vmatpush1.bf16.msra.mxu0 0
    %146 = vmatprep.subr.bf16.mxu0 0
    %147 = vmatpush1.bf16.msra.mxu0 0
    %148 = vmatprep.subr.bf16.mxu0 0
    %149 = vmatpush1.bf16.msra.mxu0 0
    %150 = vmatprep.subr.bf16.mxu0 0
    %151 = vmatpush1.bf16.msra.mxu0 0
    %152 = vmatprep.subr.bf16.mxu0 0
    %153 = vmatpush1.bf16.msra.mxu0 0
    %154 = vmatprep.subr.bf16.mxu0 0
    %155 = vmatpush1.bf16.msra.mxu0 0
    %156 = vmatprep.subr.bf16.mxu0 0
    %157 = vmatpush1.bf16.msra.mxu0 0
    %158 = vmatprep.subr.bf16.mxu0 0
    %159 = vmatpush1.bf16.msra.mxu0 0
    %160 = vmatprep.subr.bf16.mxu0 0
    %161 = vmatpush1.bf16.msra.mxu0 0
    %162 = vmatprep.subr.bf16.mxu0 0
    %163 = vmatpush1.bf16.msra.mxu0 0
    %164 = vmatprep.subr.bf16.mxu0 0
    %165 = vmatpush1.bf16.msra.mxu0 0
    %166 = vmatprep.subr.bf16.mxu0 0
    %167 = vmatpush1.bf16.msra.mxu0 0
    %168 = vmatprep.subr.bf16.mxu0 0
    %169 = vmatpush1.bf16.msra.mxu0 0
    %170 = vmatprep.mubr.bf16.mxu0 0
    %171 = vmatmul.mubr.bf16.gmra.mrb[0].mxu0 %v136
    %v172 = vpop.f32.mrb[0].mxu0
    %v173 = vadd.f32 0.0, %v172
    %v174 = vpop.f32.mrb[0].mxu0
    %v175 = vpop.f32.mrb[0].mxu0
    %v176 = vpop.f32.mrb[0].mxu0
    %177 = vdwg.mxu0
    %v178 = vadd.f32 %v116, %v173
    %v179 = vxor.u32 %v178, 2147483648
    %v180 = vmul.f32 %v179, 1.442695
    %v181 = vpow.pop %v180
    %v182 = vadd.f32 %v181, 1.0
    %v183 = vrcp.pop %v182
    %v184 = vmul.f32 1.0, %v183
    %v185 = vtanh.pop %v178
    %187 = vrot.lane.b32.xlu0 %v114, 32
    %v188 = vpop.permute.xlu0 %187
    %v190 = vmul.f32 %v184, %v188
    %192 = vrot.lane.b32.xlu0 %v185, 32
    %v193 = vpop.permute.xlu0 %192
    %v195 = vmul.f32 %v184, %v193
    %197 = vrot.lane.b32.xlu0 %v195, 32
    %v198 = vpop.permute.xlu0 %197
    %v200 = vadd.f32 %v190, %v198
    %v201 = vtanh.pop %v200
    %203 = vrot.lane.b32.xlu0 %v201, 32
    %v204 = vpop.permute.xlu0 %203
    %v206 = vmul.f32 %v184, %v204
    %208 = vrot.lane.b32.xlu0 %v206, 64
    %v209 = vpop.permute.xlu0 %208
    %211 = vst.msk [vmem:[%s10] sm:$0xff] %vm134, %v209
    %213 = vrot.lane.b32.xlu0 %v200, 96
    %v214 = vpop.permute.xlu0 %213
    %216 = vst.msk [vmem:[%s11] sm:$0xff] %vm134, %v214
    %s217 = scalar_lea.vmem %s10, 8
    %v218 = vld [vmem:[%s217] sm:$0xff]
    %s219 = scalar_lea.vmem %s11, 8
    %v220 = vld [vmem:[%s219] sm:$0xff]
    %v221 = vpack.c.bf16 %v206, %v206
    %v222 = vld [vmem:[%s5] sm:$0xf]
    %v223 = vld [vmem:[%s5 + $0x4] sm:$0xf]
    %v224 = vld [vmem:[%s5 + $0x8] sm:$0xf]
    %v225 = vld [vmem:[%s5 + $0xc] sm:$0xf]
    %v226 = vpack.c.bf16 %v218, %v218
    %s227 = scalar_lea.vmem %s4, 16
    %v228 = vld [vmem:[%s227] sm:$0xf]
    %v229 = vld [vmem:[%s227 + $0x4] sm:$0xf]
    %v230 = vld [vmem:[%s227 + $0x8] sm:$0xf]
    %v231 = vld [vmem:[%s227 + $0xc] sm:$0xf]
    %v236 = vunpack.c.l.b16 %v228
    %v237 = vunpack.c.l.b16 %v229
    %v238 = vunpack.c.l.b16 %v230
    %v239 = vunpack.c.l.b16 %v231
    %v240 = vpack.c.b16 %v237, %v236
    %v241 = vpack.c.b16 %v239, %v238
    %v245 = vsel %vm134, %v226, 0
    %247 = vmatprep.subr.bf16.mxu0 0
    %248 = vmatpush1.bf16.msra.mxu0 %v240
    %249 = vmatprep.subr.bf16.mxu0 0
    %250 = vmatpush1.bf16.msra.mxu0 %v241
    %251 = vmatprep.subr.bf16.mxu0 0
    %252 = vmatpush1.bf16.msra.mxu0 0
    %253 = vmatprep.subr.bf16.mxu0 0
    %254 = vmatpush1.bf16.msra.mxu0 0
    %255 = vmatprep.subr.bf16.mxu0 0
    %256 = vmatpush1.bf16.msra.mxu0 0
    %257 = vmatprep.subr.bf16.mxu0 0
    %258 = vmatpush1.bf16.msra.mxu0 0
    %259 = vmatprep.subr.bf16.mxu0 0
    %260 = vmatpush1.bf16.msra.mxu0 0
    %261 = vmatprep.subr.bf16.mxu0 0
    %262 = vmatpush1.bf16.msra.mxu0 0
    %263 = vmatprep.subr.bf16.mxu0 0
    %264 = vmatpush1.bf16.msra.mxu0 0
    %265 = vmatprep.subr.bf16.mxu0 0
    %266 = vmatpush1.bf16.msra.mxu0 0
    %267 = vmatprep.subr.bf16.mxu0 0
    %268 = vmatpush1.bf16.msra.mxu0 0
    %269 = vmatprep.subr.bf16.mxu0 0
    %270 = vmatpush1.bf16.msra.mxu0 0
    %271 = vmatprep.subr.bf16.mxu0 0
    %272 = vmatpush1.bf16.msra.mxu0 0
    %273 = vmatprep.subr.bf16.mxu0 0
    %274 = vmatpush1.bf16.msra.mxu0 0
    %275 = vmatprep.subr.bf16.mxu0 0
    %276 = vmatpush1.bf16.msra.mxu0 0
    %277 = vmatprep.subr.bf16.mxu0 0
    %278 = vmatpush1.bf16.msra.mxu0 0
    %279 = vmatprep.mubr.bf16.mxu0 0
    %280 = vmatmul.mubr.bf16.gmra.mrb[0].mxu0 %v245
    %v281 = vpop.f32.mrb[0].mxu0
    %v282 = vadd.f32 0.0, %v281
    %v283 = vpop.f32.mrb[0].mxu0
    %v284 = vpop.f32.mrb[0].mxu0
    %v285 = vpop.f32.mrb[0].mxu0
    %286 = vdwg.mxu0
    %288 = vrot.lane.b32.xlu0 %v221, 64
    %v289 = vpop.permute.xlu0 %288
    %v294 = vunpack.c.l.b16 %v222
    %v295 = vunpack.c.l.b16 %v223
    %v296 = vunpack.c.l.b16 %v224
    %v297 = vunpack.c.l.b16 %v225
    %v298 = vpack.c.b16 %v295, %v294
    %v299 = vpack.c.b16 %v297, %v296
    %v303 = vsel %vm134, %v289, 0
    %305 = vmatprep.subr.bf16.mxu0 0
    %306 = vmatpush1.bf16.msra.mxu0 %v298
    %307 = vmatprep.subr.bf16.mxu0 0
    %308 = vmatpush1.bf16.msra.mxu0 %v299
    %309 = vmatprep.subr.bf16.mxu0 0
    %310 = vmatpush1.bf16.msra.mxu0 0
    %311 = vmatprep.subr.bf16.mxu0 0
    %312 = vmatpush1.bf16.msra.mxu0 0
    %313 = vmatprep.subr.bf16.mxu0 0
    %314 = vmatpush1.bf16.msra.mxu0 0
    %315 = vmatprep.subr.bf16.mxu0 0
    %316 = vmatpush1.bf16.msra.mxu0 0
    %317 = vmatprep.subr.bf16.mxu0 0
    %318 = vmatpush1.bf16.msra.mxu0 0
    %319 = vmatprep.subr.bf16.mxu0 0
    %320 = vmatpush1.bf16.msra.mxu0 0
    %321 = vmatprep.subr.bf16.mxu0 0
    %322 = vmatpush1.bf16.msra.mxu0 0
    %323 = vmatprep.subr.bf16.mxu0 0
    %324 = vmatpush1.bf16.msra.mxu0 0
    %325 = vmatprep.subr.bf16.mxu0 0
    %326 = vmatpush1.bf16.msra.mxu0 0
    %327 = vmatprep.subr.bf16.mxu0 0
    %328 = vmatpush1.bf16.msra.mxu0 0
    %329 = vmatprep.subr.bf16.mxu0 0
    %330 = vmatpush1.bf16.msra.mxu0 0
    %331 = vmatprep.subr.bf16.mxu0 0
    %332 = vmatpush1.bf16.msra.mxu0 0
    %333 = vmatprep.subr.bf16.mxu0 0
    %334 = vmatpush1.bf16.msra.mxu0 0
    %335 = vmatprep.subr.bf16.mxu0 0
    %336 = vmatpush1.bf16.msra.mxu0 0
    %337 = vmatprep.mubr.bf16.mxu0 0
    %338 = vmatmul.mubr.bf16.gmra.mrb[0].mxu0 %v303
    %v339 = vpop.f32.mrb[0].mxu0
    %v340 = vadd.f32 %v282, %v339
    %v341 = vpop.f32.mrb[0].mxu0
    %v342 = vpop.f32.mrb[0].mxu0
    %v343 = vpop.f32.mrb[0].mxu0
    %344 = vdwg.mxu0
    %s345 = scalar_lea.vmem %s6, 1
    %v346 = vld [vmem:[%s345] sm:$0x1]
    %v348 = vlaneseq
    %v349 = vshrl.u32 %v348, 7
    %v350 = vsub.s32 0, %v349
    %v351 = vrot.slane %v346, %v350
    %v353 = vadd.f32 %v340, %v351
    %v354 = vxor.u32 %v353, 2147483648
    %v355 = vmul.f32 %v354, 1.442695
    %v356 = vpow.pop %v355
    %v357 = vadd.f32 %v356, 1.0
    %v358 = vrcp.pop %v357
    %v359 = vmul.f32 1.0, %v358
    %v360 = vtanh.pop %v353
    %362 = vrot.lane.b32.xlu0 %v220, 32
    %v363 = vpop.permute.xlu0 %362
    %v365 = vmul.f32 %v359, %v363
    %367 = vrot.lane.b32.xlu0 %v360, 32
    %v368 = vpop.permute.xlu0 %367
    %v370 = vmul.f32 %v359, %v368
    %372 = vrot.lane.b32.xlu0 %v370, 32
    %v373 = vpop.permute.xlu0 %372
    %v375 = vadd.f32 %v365, %v373
    %v376 = vtanh.pop %v375
    %378 = vrot.lane.b32.xlu0 %v376, 32
    %v379 = vpop.permute.xlu0 %378
    %v381 = vmul.f32 %v359, %v379
    %383 = vrot.lane.b32.xlu0 %v381, 64
    %v384 = vpop.permute.xlu0 %383
    %386 = vst.msk [vmem:[%s217] sm:$0xff] %vm134, %v384
    %388 = vrot.lane.b32.xlu0 %v375, 96
    %v389 = vpop.permute.xlu0 %388
    %391 = vst.msk [vmem:[%s219] sm:$0xff] %vm134, %v389
    %v392 = vpack.c.bf16 %v381, %v381
    %v393 = vld [vmem:[%s7] sm:$0xf]
    %v394 = vld [vmem:[%s7 + $0x4] sm:$0xf]
    %v395 = vld [vmem:[%s7 + $0x8] sm:$0xf]
    %v396 = vld [vmem:[%s7 + $0xc] sm:$0xf]
    %v397 = vld [vmem:[%s8] sm:$0x1]
    %v399 = vlaneseq
    %v400 = vshrl.u32 %v399, 7
    %v401 = vsub.s32 0, %v400
    %v402 = vrot.slane %v397, %v401
    %405 = vrot.lane.b32.xlu0 %v392, 64
    %v406 = vpop.permute.xlu0 %405
    %v411 = vunpack.c.l.b16 %v393
    %v412 = vunpack.c.l.b16 %v394
    %v413 = vunpack.c.l.b16 %v395
    %v414 = vunpack.c.l.b16 %v396
    %v415 = vpack.c.b16 %v412, %v411
    %v416 = vpack.c.b16 %v414, %v413
    %v420 = vsel %vm134, %v406, 0
    %422 = vmatprep.subr.bf16.mxu0 0
    %423 = vmatpush1.bf16.msra.mxu0 %v415
    %424 = vmatprep.subr.bf16.mxu0 0
    %425 = vmatpush1.bf16.msra.mxu0 %v416
    %426 = vmatprep.subr.bf16.mxu0 0
    %427 = vmatpush1.bf16.msra.mxu0 0
    %428 = vmatprep.subr.bf16.mxu0 0
    %429 = vmatpush1.bf16.msra.mxu0 0
    %430 = vmatprep.subr.bf16.mxu0 0
    %431 = vmatpush1.bf16.msra.mxu0 0
    %432 = vmatprep.subr.bf16.mxu0 0
    %433 = vmatpush1.bf16.msra.mxu0 0
    %434 = vmatprep.subr.bf16.mxu0 0
    %435 = vmatpush1.bf16.msra.mxu0 0
    %436 = vmatprep.subr.bf16.mxu0 0
    %437 = vmatpush1.bf16.msra.mxu0 0
    %438 = vmatprep.subr.bf16.mxu0 0
    %439 = vmatpush1.bf16.msra.mxu0 0
    %440 = vmatprep.subr.bf16.mxu0 0
    %441 = vmatpush1.bf16.msra.mxu0 0
    %442 = vmatprep.subr.bf16.mxu0 0
    %443 = vmatpush1.bf16.msra.mxu0 0
    %444 = vmatprep.subr.bf16.mxu0 0
    %445 = vmatpush1.bf16.msra.mxu0 0
    %446 = vmatprep.subr.bf16.mxu0 0
    %447 = vmatpush1.bf16.msra.mxu0 0
    %448 = vmatprep.subr.bf16.mxu0 0
    %449 = vmatpush1.bf16.msra.mxu0 0
    %450 = vmatprep.subr.bf16.mxu0 0
    %451 = vmatpush1.bf16.msra.mxu0 0
    %452 = vmatprep.subr.bf16.mxu0 0
    %453 = vmatpush1.bf16.msra.mxu0 0
    %454 = vmatprep.mubr.bf16.mxu0 0
    %455 = vmatmul.mubr.bf16.gmra.mrb[0].mxu0 %v420
    %v456 = vpop.f32.mrb[0].mxu0
    %v457 = vadd.f32 %v402, %v456
    %v458 = vpop.f32.mrb[0].mxu0
    %v459 = vpop.f32.mrb[0].mxu0
    %v460 = vpop.f32.mrb[0].mxu0
    %461 = vdwg.mxu0
    %s462 = scalar_lea.vmem [#allocation3], %s112
    %vm463 = vcmask 130048
    %464 = vst.msk [vmem:[%s462] sm:$0xff] %vm463, %v457
    // Predicated region
    $region42: #{decoder_forward_seq.1} parent=1 // pred_check
      _
    $region43: #{decoder_forward_seq.1} parent=1 // pred_check_branch
      %466 = sbr.rel (0) target = $region45
    $region44: #{decoder_forward_seq.1} parent=1 // pred_region
      %s468 = ssub.s32 128, 128
      %469 = vsyncadd [#allocation4], %s468
      %s471 = sshll.u32 [#allocation3], 4
      %s472 = int_to_ptr.vmem [resolvable:$true] %s471
      %474 = dma.vmem_to_hbm [thread:$0]  %s472, 128, %s9, [#allocation4]
    $region45: #{decoder_forward_seq.1} parent=1 // pred_fallthru
      _
    // Predicated region
    $region46: #{decoder_forward_seq.1} parent=1 // pred_check
      _
    $region47: #{decoder_forward_seq.1} parent=1 // pred_check_branch
      %476 = sbr.rel (0) target = $region49
    $region48: #{decoder_forward_seq.1} parent=1 // pred_region
      _
    $region49: #{decoder_forward_seq.1} parent=1 // pred_fallthru
      _
    // Predicated region
    $region50: #{decoder_forward_seq.1} parent=1 // pred_check
      _
    $region51: #{decoder_forward_seq.1} parent=1 // pred_check_branch
      %478 = sbr.rel (0) target = $region53
    $region52: #{decoder_forward_seq.1} parent=1 // pred_region
      _
    $region53: #{decoder_forward_seq.1} parent=1 // pred_fallthru
      _
    // Predicated region
    $region54: #{decoder_forward_seq.1} parent=1 // pred_check
      _
    $region55: #{decoder_forward_seq.1} parent=1 // pred_check_branch
      %480 = sbr.rel (0) target = $region57
    $region56: #{decoder_forward_seq.1} parent=1 // pred_region
      %481 = dma.done [#allocation4], 128
    $region57: #{decoder_forward_seq.1} parent=1 // pred_fallthru
      _
    // Predicated region
    $region58: #{decoder_forward_seq.1} parent=1 // pred_check
      _
    $region59: #{decoder_forward_seq.1} parent=1 // pred_check_branch
      %483 = sbr.rel (0) target = $region61
    $region60: #{decoder_forward_seq.1} parent=1 // pred_region
      _
    $region61: #{decoder_forward_seq.1} parent=1 // pred_fallthru
      _
    // Predicated region
    $region62: #{decoder_forward_seq.1} parent=1 // pred_check
      _
    $region63: #{decoder_forward_seq.1} parent=1 // pred_check_branch
      %485 = sbr.rel (0) target = $region65
    $region64: #{decoder_forward_seq.1} parent=1 // pred_region
      _
    $region65: #{decoder_forward_seq.1} parent=1 // pred_fallthru
      _
    %486 = vsyncpa [#allocation4], 1

</llo_original>
